<compile_context>
chip_gen: v5e
topology: v5e:2x2
jax: 0.10.0
libtpu: 0.0.40
codegen_flags: <defaults>
</compile_context>

<pallas_src>
import functools

import numpy as np
import jax
import jax.numpy as jnp
from jax import lax
from jax.experimental import pallas as pl
from jax.experimental.pallas import tpu as pltpu


COMPUTE_DTYPE = jnp.bfloat16     # MXU operand dtype and inter-layer activation dtype
HALO = 16                        # halo rows per tile (>= max J-1 = 14), multiple of 8
LANE_CAP = 256                   # max output-channel chunk width (MXU N tile)
WASTE_CAP = 64                   # max groups densified into one block-diagonal chunk
VMEM_CAP = 48 * 1024 * 1024      # known-good upper bound for the scoped VMEM limit


def _ceil_to(v, m):
    return -(-v // m) * m


# ----------------------------------------------------------------------------
# Pallas kernel: one (batch, time-tile) step of a grouped Conv1d (+bias, +lrelu)
# ----------------------------------------------------------------------------
def _conv_kernel(*refs, t_tile, halo, n_chunks, chunk_w, c_out_chunk, offsets,
                 apply_lrelu, slope):
    """
    refs (halo):    x_main (t_tile, D_row) bf16, x_halo (HALO, D_row) bf16,
                    w (n_chunks, J*chunk_w, c_out_chunk) bf16 (VMEM resident),
                    bias (1, C_out) f32, out (t_tile, C_out), xs scratch.
    refs (no halo): x_main, w, bias, out.
    All loop bounds / slice offsets are static Python ints.
    """
    if halo:
        x_ref, h_ref, w_ref, b_ref, o_ref, xs_ref = refs
        # Stitch main tile + 16-row halo into one contiguous VMEM window (aligned copies).
        xs_ref[0:t_tile, :] = x_ref[...]
        xs_ref[t_tile:t_tile + HALO, :] = h_ref[...]
        src = xs_ref
    else:
        x_ref, w_ref, b_ref, o_ref = refs
        src = x_ref

    for c in range(n_chunks):
        cs = c * chunk_w
        # Chunk-major layout: all taps of row-offset j for this chunk are one
        # contiguous lane slice -> J pieces (not K) per chunk.
        pieces = [src[j:j + t_tile, cs:cs + chunk_w] for j in offsets]
        xw = pieces[0] if len(pieces) == 1 else jnp.concatenate(pieces, axis=1)
        acc = jnp.dot(xw, w_ref[c], preferred_element_type=jnp.float32)

        co0 = c * c_out_chunk
        y = acc + b_ref[0, co0:co0 + c_out_chunk][None, :]
        if apply_lrelu:
            y = jnp.where(y >= 0, y, slope * y)
        o_ref[:, co0:co0 + c_out_chunk] = y.astype(o_ref.dtype)


# ----------------------------------------------------------------------------
# Wrapper: padding / space-to-depth glue + pallas_call (no window duplication)
# ----------------------------------------------------------------------------
def conv1d_pallas(x_btc, w_prep, bias2, meta):
    """Grouped Conv1d (+ optional LeakyReLU) on channels-last (B, T, C_in) input."""
    B, T, C_in = x_btc.shape
    K, stride, pad = meta['K'], meta['stride'], meta['pad']
    C_out, J = meta['C_out'], meta['J']
    T_out = (T + 2 * pad - K) // stride + 1

    x = x_btc.astype(COMPUTE_DTYPE)          # no-op when fed by a previous Pallas layer

    T_tile = min(meta['max_t_tile'], _ceil_to(max(T_out, 1), HALO))
    nT = -(-T_out // T_tile)
    R_need = (nT + 1) * T_tile               # frame rows (incl. halo slack), all zero-padded

    if meta['im2col']:
        # C_in == 1, stride == 1: fold the K taps directly into the row width.
        xf = x[:, :, 0]
        right = R_need + K - 1 - (T + pad)
        xf = jnp.pad(xf, ((0, 0), (pad, max(right, 0))))
        # TODO(synk): avoid this K-wide duplicated buffer for the longest-T first layer.
        rows = jnp.stack([xf[:, k:k + R_need] for k in range(K)], axis=-1)
    else:
        rows = jnp.pad(x, ((0, 0), (pad, pad), (0, 0)))
        Tp = T + 2 * pad
        if stride > 1:
            # space-to-depth, chunk-major lanes:
            #   lane = chunk*(stride*piece_w) + phase*piece_w + ch_in_chunk
            T4 = -(-Tp // stride)
            if T4 * stride != Tp:
                rows = jnp.pad(rows, ((0, 0), (0, T4 * stride - Tp), (0, 0)))
            rows = rows.reshape(B, T4, stride, meta['n_chunks'], meta['piece_w'])
            rows = rows.transpose(0, 1, 3, 2, 4).reshape(B, T4, stride * C_in)
        R = rows.shape[1]
        if R < R_need:
            rows = jnp.pad(rows, ((0, 0), (0, R_need - R), (0, 0)))
        else:
            rows = rows[:, :R_need]

    D_row = rows.shape[-1]
    halo = J > 1
    hb = T_tile // HALO

    kernel = functools.partial(
        _conv_kernel, t_tile=T_tile, halo=halo,
        n_chunks=meta['n_chunks'], chunk_w=meta['chunk_w'],
        c_out_chunk=meta['c_out_chunk'], offsets=tuple(range(J)),
        apply_lrelu=meta['apply_lrelu'], slope=meta['slope'])

    in_specs = [pl.BlockSpec((None, T_tile, D_row), lambda b, t: (b, t, 0))]
    if halo:
        # 16-row halo block over the SAME rows array (overlap expressed in the grid
        # spec; no duplicated window tensor in HBM).
        in_specs.append(
            pl.BlockSpec((None, HALO, D_row), lambda b, t: (b, (t + 1) * hb, 0)))
    in_specs += [
        # whole (small, bf16) weight stays VMEM resident; constant index -> fetched once
        pl.BlockSpec(w_prep.shape, lambda b, t: (0, 0, 0)),
        pl.BlockSpec((1, C_out), lambda b, t: (0, 0)),
    ]
    scratch = [pltpu.VMEM((T_tile + HALO, D_row), COMPUTE_DTYPE)] if halo else []
    operands = (rows, rows, w_prep, bias2) if halo else (rows, w_prep, bias2)

    out_bytes = 4 if meta['out_dtype'] == jnp.float32 else 2
    w_bytes = int(w_prep.size) * 2
    est = (2 * w_bytes
           + 2 * T_tile * D_row * 2
           + (2 * HALO * D_row * 2 if halo else 0)
           + ((T_tile + HALO) * D_row * 2 if halo else 0)
           + 2 * T_tile * C_out * out_bytes
           + T_tile * J * meta['chunk_w'] * 2
           + T_tile * meta['c_out_chunk'] * 4
           + 2 * C_out * 4)
    vmem_limit = int(min(VMEM_CAP, max(32 * 1024 * 1024, est * 3 // 2 + 8 * 1024 * 1024)))

    out = pl.pallas_call(
        kernel,
        out_shape=jax.ShapeDtypeStruct((B, nT * T_tile, C_out), meta['out_dtype']),
        grid_spec=pltpu.PrefetchScalarGridSpec(
            num_scalar_prefetch=0,
            grid=(B, nT),
            in_specs=in_specs,
            out_specs=pl.BlockSpec((None, T_tile, C_out), lambda b, t: (b, t, 0)),
            scratch_shapes=scratch),
        compiler_params=pltpu.CompilerParams(
            dimension_semantics=("parallel", "parallel"),
            vmem_limit_bytes=vmem_limit),
    )(*operands)

    # Rows past T_out are computed from zero padding; trim them (required).
    return out[:, :T_out, :]


# ----------------------------------------------------------------------------
# Parameter / layer-config preparation (host side, init time only)
# ----------------------------------------------------------------------------
# (C_in, C_out, K, stride, pad, groups)
_LAYER_CFGS = [
    (1,    16,   15, 1, 7,  1),
    (16,   64,   41, 4, 20, 4),
    (64,   256,  41, 4, 20, 16),
    (256,  512,  41, 4, 20, 64),
    (512,  1024, 41, 4, 20, 256),
    (1024, 1024, 41, 4, 20, 512),
    (1024, 1024, 5,  1, 2,  1),
]
_POST_CFG = (1024, 1, 3, 1, 1, 1)


def _make_layer(key, c_in, c_out, K, stride, pad, groups, apply_lrelu, slope, out_dtype):
    c_in_g = c_in // groups
    c_out_g = c_out // groups
    kw, kb = jax.random.split(key)
    w = jax.random.normal(kw, (c_out, c_in_g, K), jnp.float32) * (1.0 / np.sqrt(c_in_g * K))
    b = jax.random.normal(kb, (c_out,), jnp.float32) * 0.01
    w_np = np.asarray(w)

    im2col = (c_in == 1 and groups == 1 and stride == 1)

    if im2col:
        # Taps live in the row width built by the wrapper: weight is (K, C_out).
        n_chunks, piece_w, c_out_chunk = 1, 1, c_out
        J, chunk_w = 1, K
        Wk = w_np[:, 0, :].T[None]                       # (1, K, c_out)
        D_row = K
    else:
        # Group chunking: up to `gc` groups share one dense (block-diag) MXU tile,
        # sized so the output chunk is <= LANE_CAP lanes and waste is bounded.
        gc = max(1, min(groups, max(1, LANE_CAP // max(1, c_out_g)), WASTE_CAP))
        while groups % gc:
            gc -= 1
        n_chunks = groups // gc
        piece_w = gc * c_in_g
        c_out_chunk = gc * c_out_g
        J = -(-K // stride)
        chunk_w = stride * piece_w                        # contiguous lanes per row offset j
        # Chunk-major, tap-folded, block-diag-within-chunk weight:
        # row index = j*chunk_w + r*piece_w + gl*c_in_g + ci ; col = gl*c_out_g + co_local
        Wk = np.zeros((n_chunks, J * chunk_w, c_out_chunk), np.float32)
        for c in range(n_chunks):
            for gl in range(gc):
                g = c * gc + gl
                blk = w_np[g * c_out_g:(g + 1) * c_out_g]      # (c_out_g, c_in_g, K)
                for k in range(K):
                    j, r = divmod(k, stride)
                    r0 = j * chunk_w + r * piece_w + gl * c_in_g
                    Wk[c, r0:r0 + c_in_g,
                       gl * c_out_g:(gl + 1) * c_out_g] = blk[:, :, k].T
        D_row = stride * c_in if stride > 1 else c_in

    max_t_tile = 256 if D_row >= 2048 else 512

    meta = dict(C_out=c_out, K=K, stride=stride, pad=pad, J=J,
                n_chunks=n_chunks, piece_w=piece_w, chunk_w=chunk_w,
                c_out_chunk=c_out_chunk, im2col=im2col,
                apply_lrelu=apply_lrelu, slope=slope,
                out_dtype=out_dtype, max_t_tile=max_t_tile)

    w_k = jnp.asarray(Wk, dtype=COMPUTE_DTYPE)
    bias2 = jnp.asarray(b).reshape(1, c_out)
    return w_k, bias2, meta, w, b


# ----------------------------------------------------------------------------
# DiscriminatorS module (Pallas version)
# ----------------------------------------------------------------------------
class DiscriminatorSPallas:
    def __init__(self, key, lrelu_slope=0.1):
        self.lrelu_slope = lrelu_slope
        cfgs = _LAYER_CFGS + [_POST_CFG]
        keys = jax.random.split(key, len(cfgs))
        self.layers = []
        self.raw_params = []       # PyTorch-layout params for the reference check
        for i, (ci, co, k, s, p, g) in enumerate(cfgs):
            last = (i == len(cfgs) - 1)
            apply_lrelu = not last                          # conv_post has no LeakyReLU
            out_dtype = jnp.float32 if last else COMPUTE_DTYPE
            w_k, b2, meta, w, b = _make_layer(keys[i], ci, co, k, s, p, g,
                                              apply_lrelu, lrelu_slope, out_dtype)
            self.layers.append((w_k, b2, meta))
            self.raw_params.append((w, b, s, p, g))

    def __call__(self, x_nct):
        # x_nct: (B, 1, T), PyTorch NCT layout
        x = jnp.transpose(x_nct, (0, 2, 1))            # -> (B, T, C) channels-last chain
        fmap = []
        for (w_k, b2, meta) in self.layers:
            x = conv1d_pallas(x, w_k, b2, meta)        # (B, T_out, C_out) bf16 (f32 last)
            fmap.append(jnp.transpose(x, (0, 2, 1)))   # returned fmaps are NCT like torch
        out = fmap[-1].reshape(fmap[-1].shape[0], -1)  # torch.flatten(x, 1, -1)
        return out, fmap


# ----------------------------------------------------------------------------
# Pure-JAX reference (lax.conv, same bf16 input/weight rounding) for validation
# ----------------------------------------------------------------------------
def _ref_conv(x, w, b, stride, pad, groups):
    xq = x.astype(jnp.bfloat16).astype(jnp.float32)
    wq = w.astype(jnp.bfloat16).astype(jnp.float32)
    y = lax.conv_general_dilated(
        xq, wq, window_strides=(stride,), padding=[(pad, pad)],
        dimension_numbers=('NCH', 'OIH', 'NCH'),
        feature_group_count=groups, precision=lax.Precision.HIGHEST)
    return y + b[None, :, None]


def reference_forward(x, raw_params, slope):
    fmap = []
    n = len(raw_params)
    for i, (w, b, stride, pad, groups) in enumerate(raw_params):
        x = _ref_conv(x, w, b, stride, pad, groups)
        if i < n - 1:
            x = jnp.where(x >= 0, x, slope * x)
        fmap.append(x)
    return x.reshape(x.shape[0], -1), fmap


if __name__ == "__main__":
    key = jax.random.PRNGKey(0)
    k_x, k_p = jax.random.split(key)

    B, T = 2, 256
    x = jax.random.normal(k_x, (B, 1, T), jnp.float32)   # (B, 1, T) like PyTorch

    model = DiscriminatorSPallas(k_p, lrelu_slope=0.1)
    out, fmap = model(x)
    out = jax.block_until_ready(out)
    fmap = jax.block_until_ready(fmap)

    ref_out, ref_fmap = reference_forward(x, model.raw_params, model.lrelu_slope)

    def _f32(a):
        return np.asarray(jnp.asarray(a, jnp.float32))

    np.testing.assert_allclose(_f32(out), _f32(ref_out), rtol=2e-2, atol=2e-2)
    for a, r in zip(fmap, ref_fmap):
        assert a.shape == r.shape, (a.shape, r.shape)
        np.testing.assert_allclose(_f32(a), _f32(r), rtol=2e-2, atol=2e-2)

    print("KERNEL_OK")
</pallas_src>

<mosaic_0001>
module attributes {stable_mosaic.version = 11 : i64} {
  func.func @_conv_kernel(%arg0: i32, %arg1: i32, %arg2: memref<1x256x15xbf16, #tpu.memory_space<vmem>>, %arg3: memref<1x15x16xbf16, #tpu.memory_space<vmem>>, %arg4: memref<1x16xf32, #tpu.memory_space<vmem>>, %arg5: memref<1x256x16xbf16, #tpu.memory_space<vmem>>) attributes {dimension_semantics = [#tpu.dimension_semantics<parallel>, #tpu.dimension_semantics<parallel>], iteration_bounds = array<i64: 2, 1>, scalar_prefetch = 0 : i64, scratch_operands = 0 : i64, tpu.core_type = #tpu.core_type<tc>, window_params = [{transform_indices = @transform_0, window_bounds = array<i64: 1, 256, 15>}, {pipeline_mode = #tpu.pipeline_mode<synchronous>, transform_indices = @transform_1, window_bounds = array<i64: 1, 15, 16>}, {pipeline_mode = #tpu.pipeline_mode<synchronous>, transform_indices = @transform_2, window_bounds = array<i64: 1, 16>}, {transform_indices = @transform_3, window_bounds = array<i64: 1, 256, 16>}]} {
    %c0 = arith.constant 0 : index
    %c0_0 = arith.constant 0 : index
    %c0_1 = arith.constant 0 : index
    %0 = vector.load %arg2[%c0, %c0_0, %c0_1] : memref<1x256x15xbf16, #tpu.memory_space<vmem>>, vector<1x256x15xbf16>
    %1 = vector.shape_cast %0 : vector<1x256x15xbf16> to vector<256x15xbf16>
    %c0_2 = arith.constant 0 : index
    %c0_3 = arith.constant 0 : index
    %c0_4 = arith.constant 0 : index
    %2 = vector.load %arg3[%c0_2, %c0_3, %c0_4] : memref<1x15x16xbf16, #tpu.memory_space<vmem>>, vector<1x15x16xbf16>
    %3 = vector.shape_cast %2 : vector<1x15x16xbf16> to vector<15x16xbf16>
    %cst = arith.constant dense<0.000000e+00> : vector<256x16xf32>
    %4 = tpu.matmul %1, %3, %cst {dimension_numbers = #tpu.dot_dimension_numbers<[1], [0], [0], [1], [0, 0, 1, 1], [], []>} : vector<256x15xbf16>, vector<15x16xbf16>, vector<256x16xf32> -> vector<256x16xf32>
    %c0_5 = arith.constant 0 : index
    %c0_6 = arith.constant 0 : index
    %5 = vector.load %arg4[%c0_5, %c0_6] : memref<1x16xf32, #tpu.memory_space<vmem>>, vector<1x16xf32>
    %6 = vector.shape_cast %5 : vector<1x16xf32> to vector<16xf32>
    %7 = vector.shape_cast %6 : vector<16xf32> to vector<1x16xf32>
    %8 = vector.broadcast %7 : vector<1x16xf32> to vector<256x16xf32>
    %9 = arith.addf %4, %8 : vector<256x16xf32>
    %cst_7 = arith.constant 0.000000e+00 : f32
    %10 = vector.broadcast %cst_7 : f32 to vector<256x16xf32>
    %11 = arith.cmpf oge, %9, %10 : vector<256x16xf32>
    %cst_8 = arith.constant 1.000000e-01 : f32
    %12 = vector.broadcast %cst_8 : f32 to vector<256x16xf32>
    %13 = arith.mulf %12, %9 : vector<256x16xf32>
    %14 = arith.select %11, %9, %13 : vector<256x16xi1>, vector<256x16xf32>
    %15 = arith.truncf %14 : vector<256x16xf32> to vector<256x16xbf16>
    %c0_9 = arith.constant 0 : index
    %c0_10 = arith.constant 0 : index
    %c0_11 = arith.constant 0 : index
    %16 = vector.load %arg5[%c0_9, %c0_10, %c0_11] : memref<1x256x16xbf16, #tpu.memory_space<vmem>>, vector<1x256x16xbf16>
    %17 = vector.shape_cast %16 : vector<1x256x16xbf16> to vector<256x16xbf16>
    %18 = vector.shape_cast %15 : vector<256x16xbf16> to vector<1x256x16xbf16>
    tpu.vector_store %arg5[%c0_9, %c0_10, %c0_11], %18 {strides = array<i32>} : memref<1x256x16xbf16, #tpu.memory_space<vmem>>, vector<1x256x16xbf16>,
    return
  }
  func.func @transform_0(%arg0: i32, %arg1: i32) -> (i32, i32, i32) {
    %c0_i32 = arith.constant 0 : i32
    %c0_i32_0 = arith.constant 0 : i32
    return %arg0, %arg1, %c0_i32 : i32, i32, i32
  }
  func.func @transform_1(%arg0: i32, %arg1: i32) -> (i32, i32, i32) {
    %c0_i32 = arith.constant 0 : i32
    %c0_i32_0 = arith.constant 0 : i32
    %c0_i32_1 = arith.constant 0 : i32
    %c0_i32_2 = arith.constant 0 : i32
    return %c0_i32, %c0_i32_0, %c0_i32_1 : i32, i32, i32
  }
  func.func @transform_2(%arg0: i32, %arg1: i32) -> (i32, i32) {
    %c0_i32 = arith.constant 0 : i32
    %c0_i32_0 = arith.constant 0 : i32
    %c0_i32_1 = arith.constant 0 : i32
    return %c0_i32, %c0_i32_0 : i32, i32
  }
  func.func @transform_3(%arg0: i32, %arg1: i32) -> (i32, i32, i32) {
    %c0_i32 = arith.constant 0 : i32
    %c0_i32_0 = arith.constant 0 : i32
    return %arg0, %arg1, %c0_i32 : i32, i32, i32
  }
}

</mosaic_0001>

<llo_original>
// kernel: tpu_custom_call.1
$region0: #{tpu_custom_call.1}
  #allocation0 [shape = 'u32[]', space=smem, size = 0x4, offset = 0x4, fixed_abs, tag = 'smem constant byte address 0x4 - core index']
  #allocation1 [shape = 'u32[72,128]{1,0:T(1,128)}', space=vmem, size = 0x9000, scoped, tag = 'internal scratch']
  %s0 = inlined_call_operand.vmem [shape: bf16[2,512,15], index: 0, kind: input, shape index: {}]
  %s1 = inlined_call_operand.vmem [shape: bf16[1,15,16], index: 1, kind: input, shape index: {}]
  %s2 = inlined_call_operand.vmem [shape: f32[1,16], index: 2, kind: input, shape index: {}]
  %s3 = inlined_call_operand.vmem [shape: bf16[2,256,16], index: 3, kind: output, shape index: {}]
  %s4 = sld [smem:[#allocation0]]
  $region45: #{tpu_custom_call.1} parent=0
    _
  %s6 = ssub.s32 1, %s4
  %s7 = scalar_select 0, %s6, %s4
  loop: start=0, step=1, limit=4
  $region2: #{tpu_custom_call.1} parent=0 // loop_pre_header
    _
  $region3: #{tpu_custom_call.1} parent=0 // loop_header
    %s9 = sphi 0, %s13
    %p10 = scmp.ge.s32.totalorder %s9, 4
    %s16 = sphi 0, %s28
    %s17 = sphi 0, %s24
    %s18 = sphi 0, %s16
    %s19 = sphi 0, %s17
    %s20 = sphi 0, %s18
    %s21 = sphi 0, %s19
    %s33 = sphi 0, %s35
    %s36 = sphi 0, %s33
    %s37 = sphi 0, %s36
    %s53 = sphi 0, %s37
    %s57 = sphi 0, %s57
    %s59 = sphi 0, %s57
    %s60 = sphi 0, %s59
    %s74 = sphi 0, %s60
    %s78 = sphi 0, %s78
    %s80 = sphi 0, %s78
    %s81 = sphi 0, %s80
    %s95 = sphi 0, %s81
    %s103 = sphi 0, %s105
    %s106 = sphi 0, %s103
    %s107 = sphi 0, %s106
    %s123 = sphi 0, %s107
  $region4: #{tpu_custom_call.1} parent=0 // loop_header_branch
    %12 = sbr.rel (%p10) target = $region8
  $region5: #{tpu_custom_call.1} parent=0 // loop_body
    %s14 = ssub.s32 %s9, 1
    %s15 = ssub.s32 %s9, 2
    %s22 = sadd.s32 1, %s17
    %p23 = scmp.ge.s32.totalorder %s22, 1
    %s24 = scalar_select %p23, 0, %s22
    %s25 = sadd.s32 1, %s16
    %s26 = scalar_select %p23, %s25, %s16
    %p27 = scmp.ge.s32.totalorder %s26, 2
    %s28 = scalar_select %p27, 0, %s26
    %s29 = ssub.s32 %s16, %s28
    %s30 = ssub.s32 %s17, %s24
    %s31 = sor.u32 %s29, %s30
    %p32 = scmp.eq.s32.totalorder %s31, 0
    %s34 = sadd.s32 %s33, 1
    %s35 = scalar_select %p32, %s33, %s34
    %p38 = pneg %p32
    %p39 = scmp.eq.s32.totalorder %s9, 1
    %p40 = por %p38, %p39
    %p41 = scmp.ne.s32.totalorder %s33, %s36
    %p42 = scmp.eq.s32.totalorder %s9, 0
    %p43 = por %p41, %p42
    %p44 = scmp.ne.s32.totalorder %s33, %s36
    %p45 = scmp.eq.s32.totalorder %s14, 1
    %p46 = por %p44, %p45
    %p47 = scmp.ne.s32.totalorder %s36, %s37
    %p48 = scmp.eq.s32.totalorder %s14, 0
    %p49 = por %p47, %p48
    %p50 = scmp.ne.s32.totalorder %s36, %s37
    %p51 = scmp.eq.s32.totalorder %s15, 1
    %p52 = por %p50, %p51
    %p54 = scmp.ne.s32.totalorder %s37, %s53
    %p55 = scmp.eq.s32.totalorder %s15, 0
    %p56 = por %p54, %p55
    %s58 = sadd.s32 %s57, 1
    %p61 = scmp.eq.s32.totalorder %s9, 1
    %p62 = scmp.ne.s32.totalorder %s57, %s59
    %p63 = scmp.eq.s32.totalorder %s9, 0
    %p64 = por %p62, %p63
    %p65 = scmp.ne.s32.totalorder %s57, %s59
    %p66 = scmp.eq.s32.totalorder %s14, 1
    %p67 = por %p65, %p66
    %p68 = scmp.ne.s32.totalorder %s59, %s60
    %p69 = scmp.eq.s32.totalorder %s14, 0
    %p70 = por %p68, %p69
    %p71 = scmp.ne.s32.totalorder %s59, %s60
    %p72 = scmp.eq.s32.totalorder %s15, 1
    %p73 = por %p71, %p72
    %p75 = scmp.ne.s32.totalorder %s60, %s74
    %p76 = scmp.eq.s32.totalorder %s15, 0
    %p77 = por %p75, %p76
    %s79 = sadd.s32 %s78, 1
    %p82 = scmp.eq.s32.totalorder %s9, 1
    %p83 = scmp.ne.s32.totalorder %s78, %s80
    %p84 = scmp.eq.s32.totalorder %s9, 0
    %p85 = por %p83, %p84
    %p86 = scmp.ne.s32.totalorder %s78, %s80
    %p87 = scmp.eq.s32.totalorder %s14, 1
    %p88 = por %p86, %p87
    %p89 = scmp.ne.s32.totalorder %s80, %s81
    %p90 = scmp.eq.s32.totalorder %s14, 0
    %p91 = por %p89, %p90
    %p92 = scmp.ne.s32.totalorder %s80, %s81
    %p93 = scmp.eq.s32.totalorder %s15, 1
    %p94 = por %p92, %p93
    %p96 = scmp.ne.s32.totalorder %s81, %s95
    %p97 = scmp.eq.s32.totalorder %s15, 0
    %p98 = por %p96, %p97
    %s99 = ssub.s32 %s16, %s28
    %s100 = ssub.s32 %s17, %s24
    %s101 = sor.u32 %s99, %s100
    %p102 = scmp.eq.s32.totalorder %s101, 0
    %s104 = sadd.s32 %s103, 1
    %s105 = scalar_select %p102, %s103, %s104
    %p108 = pneg %p102
    %p109 = scmp.eq.s32.totalorder %s9, 1
    %p110 = por %p108, %p109
    %p111 = scmp.ne.s32.totalorder %s103, %s106
    %p112 = scmp.eq.s32.totalorder %s9, 0
    %p113 = por %p111, %p112
    %p114 = scmp.ne.s32.totalorder %s103, %s106
    %p115 = scmp.eq.s32.totalorder %s14, 1
    %p116 = por %p114, %p115
    %p117 = scmp.ne.s32.totalorder %s106, %s107
    %p118 = scmp.eq.s32.totalorder %s14, 0
    %p119 = por %p117, %p118
    %p120 = scmp.ne.s32.totalorder %s106, %s107
    %p121 = scmp.eq.s32.totalorder %s15, 1
    %p122 = por %p120, %p121
    %p124 = scmp.ne.s32.totalorder %s107, %s123
    %p125 = scmp.eq.s32.totalorder %s15, 0
    %p126 = por %p124, %p125
    %p127 = scmp.le.s32.totalorder 1, %s9
    %p128 = scmp.lt.s32.totalorder %s9, 3
    %p129 = pnand %p127, %p128
    %p130 = pneg %p129
    // Predicated region
    $region9: #{tpu_custom_call.1} parent=5 // pred_check
      _
    $region10: #{tpu_custom_call.1} parent=5 // pred_check_branch
      %132 = sbr.rel (%p129) target = $region12
    $region11: #{tpu_custom_call.1} parent=5 // pred_region
      %s133 = ssub.s32 %s9, 1
      // Predicated region
      $region13: #{tpu_custom_call.1} parent=11 // pred_check
        %p134 = pneg %p70
      $region14: #{tpu_custom_call.1} parent=11 // pred_check_branch
        %136 = sbr.rel (%p134) target = $region16
      $region15: #{tpu_custom_call.1} parent=11 // pred_region
        _
      $region16: #{tpu_custom_call.1} parent=11 // pred_fallthru
        _
      // Predicated region
      $region17: #{tpu_custom_call.1} parent=11 // pred_check
        %p137 = pneg %p91
      $region18: #{tpu_custom_call.1} parent=11 // pred_check_branch
        %139 = sbr.rel (%p137) target = $region20
      $region19: #{tpu_custom_call.1} parent=11 // pred_region
        _
      $region20: #{tpu_custom_call.1} parent=11 // pred_fallthru
        _
    $region12: #{tpu_custom_call.1} parent=5 // pred_fallthru
      _
    %p140 = scmp.lt.s32.totalorder %s9, 2
    // Predicated region
    $region21: #{tpu_custom_call.1} parent=5 // pred_check
      %p141 = pneg %p140
    $region22: #{tpu_custom_call.1} parent=5 // pred_check_branch
      %143 = sbr.rel (%p141) target = $region24
    $region23: #{tpu_custom_call.1} parent=5 // pred_region
      // Predicated region
      $region25: #{tpu_custom_call.1} parent=23 // pred_check
        %p144 = pneg %p43
      $region26: #{tpu_custom_call.1} parent=23 // pred_check_branch
        %146 = sbr.rel (%p144) target = $region28
      $region27: #{tpu_custom_call.1} parent=23 // pred_region
        %s147 = smul.u32 32, %s17
        %p148 = scmp.lt.s32.totalorder %s16, 1
        %s149 = scalar_select %p148, %s16, 1
        %p150 = scmp.lt.s32.totalorder %s147, 63
        %s151 = scalar_select %p150, %s147, 63
        %s152 = smul.addr %s149, 64
        %s153 = sadd.s32 %s151, %s152
        %s154 = smul.addr %s153, 4
        %s155 = scalar_lea.vmem %s0, %s154
        %s156 = smul.u32 32, %s17
      $region28: #{tpu_custom_call.1} parent=23 // pred_fallthru
        _
    $region24: #{tpu_custom_call.1} parent=5 // pred_fallthru
      _
    %p157 = scmp.le.s32.totalorder 1, %s9
    %p158 = scmp.lt.s32.totalorder %s9, 3
    %p159 = pnand %p157, %p158
    %p160 = pneg %p159
    // Predicated region
    $region29: #{tpu_custom_call.1} parent=5 // pred_check
      _
    $region30: #{tpu_custom_call.1} parent=5 // pred_check_branch
      %162 = sbr.rel (%p159) target = $region32
    $region31: #{tpu_custom_call.1} parent=5 // pred_region
      %s163 = ssub.s32 %s9, 1
      %s164 = smul.u32 32, %s19
      %p165 = scmp.lt.s32.totalorder %s18, 1
      %s166 = scalar_select %p165, %s18, 1
      %p167 = scmp.lt.s32.totalorder %s164, 63
      %s168 = scalar_select %p167, %s164, 63
      %s169 = smul.addr %s166, 64
      %s170 = sadd.s32 %s168, %s169
      %s171 = smul.addr %s170, 4
      %s172 = scalar_lea.vmem %s0, %s171
      %p173 = pneg %p49
      %p174 = pneg %p46
      %p175 = pneg %p70
      %p176 = pneg %p67
      %p177 = pneg %p91
      %p178 = pneg %p88
      %p179 = pneg %p119
      %p180 = pneg %p116
      %s181 = smul.u32 32, %s19
      %p182 = scmp.lt.s32.totalorder %s18, 1
      %s183 = scalar_select %p182, %s18, 1
      %p184 = scmp.lt.s32.totalorder %s181, 31
      %s185 = scalar_select %p184, %s181, 31
      %s186 = smul.addr %s183, 32
      %s187 = sadd.s32 %s185, %s186
      %s188 = smul.addr %s187, 4
      %s189 = scalar_lea.vmem %s3, %s188
      %s190 = smul.u32 32, %s19
      %p191 = scmp.lt.s32.totalorder %s18, 1
      %s192 = scalar_select %p191, %s18, 1
      %p193 = scmp.lt.s32.totalorder %s190, 63
      %s194 = scalar_select %p193, %s190, 63
      %s195 = smul.addr %s192, 64
      %s196 = sadd.s32 %s194, %s195
      %s197 = smul.addr %s196, 4
      %s198 = scalar_lea.vmem %s0, %s197
      %s199 = smul.u32 32, %s19
      %s200 = smul.u32 32, %s19
      %p201 = scmp.lt.s32.totalorder %s18, 1
      %s202 = scalar_select %p201, %s18, 1
      %p203 = scmp.lt.s32.totalorder %s200, 31
      %s204 = scalar_select %p203, %s200, 31
      %s205 = smul.addr %s202, 32
      %s206 = sadd.s32 %s204, %s205
      %s207 = smul.addr %s206, 4
      %s208 = scalar_lea.vmem %s3, %s207
      %s209 = smul.u32 32, %s19
      %v211 = vld [vmem:[%s198] sm:$0xf]
      %v212 = vld [vmem:[%s198 + $0x4] sm:$0xf]
      %v213 = vld [vmem:[%s198 + $0x8] sm:$0xf]
      %v214 = vld [vmem:[%s198 + $0xc] sm:$0xf]
      %v215 = vld [vmem:[%s198 + $0x10] sm:$0xf]
      %v216 = vld [vmem:[%s198 + $0x14] sm:$0xf]
      %v217 = vld [vmem:[%s198 + $0x18] sm:$0xf]
      %v218 = vld [vmem:[%s198 + $0x1c] sm:$0xf]
      %v219 = vld [vmem:[%s198 + $0x20] sm:$0xf]
      %v220 = vld [vmem:[%s198 + $0x24] sm:$0xf]
      %v221 = vld [vmem:[%s198 + $0x28] sm:$0xf]
      %v222 = vld [vmem:[%s198 + $0x2c] sm:$0xf]
      %v223 = vld [vmem:[%s198 + $0x30] sm:$0xf]
      %v224 = vld [vmem:[%s198 + $0x34] sm:$0xf]
      %v225 = vld [vmem:[%s198 + $0x38] sm:$0xf]
      %v226 = vld [vmem:[%s198 + $0x3c] sm:$0xf]
      %v227 = vld [vmem:[%s198 + $0x40] sm:$0xf]
      %v228 = vld [vmem:[%s198 + $0x44] sm:$0xf]
      %v229 = vld [vmem:[%s198 + $0x48] sm:$0xf]
      %v230 = vld [vmem:[%s198 + $0x4c] sm:$0xf]
      %v231 = vld [vmem:[%s198 + $0x50] sm:$0xf]
      %v232 = vld [vmem:[%s198 + $0x54] sm:$0xf]
      %v233 = vld [vmem:[%s198 + $0x58] sm:$0xf]
      %v234 = vld [vmem:[%s198 + $0x5c] sm:$0xf]
      %v235 = vld [vmem:[%s198 + $0x60] sm:$0xf]
      %v236 = vld [vmem:[%s198 + $0x64] sm:$0xf]
      %v237 = vld [vmem:[%s198 + $0x68] sm:$0xf]
      %v238 = vld [vmem:[%s198 + $0x6c] sm:$0xf]
      %v239 = vld [vmem:[%s198 + $0x70] sm:$0xf]
      %v240 = vld [vmem:[%s198 + $0x74] sm:$0xf]
      %v241 = vld [vmem:[%s198 + $0x78] sm:$0xf]
      %v242 = vld [vmem:[%s198 + $0x7c] sm:$0xf]
      %v243 = vld [vmem:[%s1] sm:$0xf]
      %v244 = vld [vmem:[%s1 + $0x4] sm:$0xf]
      %v245 = vld [vmem:[%s2] sm:$0x1]
      %v247 = vperm.slane %v245, 0
      %v281 = vunpack.c.l.b16 %v211
      %v282 = vunpack.c.l.b16 %v212
      %v283 = vunpack.c.l.b16 %v213
      %v284 = vunpack.c.l.b16 %v214
      %v285 = vunpack.c.l.b16 %v215
      %v286 = vunpack.c.l.b16 %v216
      %v287 = vunpack.c.l.b16 %v217
      %v288 = vunpack.c.l.b16 %v218
      %v289 = vunpack.c.l.b16 %v219
      %v290 = vunpack.c.l.b16 %v220
      %v291 = vunpack.c.l.b16 %v221
      %v292 = vunpack.c.l.b16 %v222
      %v293 = vunpack.c.l.b16 %v223
      %v294 = vunpack.c.l.b16 %v224
      %v295 = vunpack.c.l.b16 %v225
      %v296 = vunpack.c.l.b16 %v226
      %v297 = vunpack.c.l.b16 %v227
      %v298 = vunpack.c.l.b16 %v228
      %v299 = vunpack.c.l.b16 %v229
      %v300 = vunpack.c.l.b16 %v230
      %v301 = vunpack.c.l.b16 %v231
      %v302 = vunpack.c.l.b16 %v232
      %v303 = vunpack.c.l.b16 %v233
      %v304 = vunpack.c.l.b16 %v234
      %v305 = vunpack.c.l.b16 %v235
      %v306 = vunpack.c.l.b16 %v236
      %v307 = vunpack.c.l.b16 %v237
      %v308 = vunpack.c.l.b16 %v238
      %v309 = vunpack.c.l.b16 %v239
      %v310 = vunpack.c.l.b16 %v240
      %v311 = vunpack.c.l.b16 %v241
      %v312 = vunpack.c.l.b16 %v242
      %v313 = vpack.c.b16 %v282, %v281
      %v314 = vpack.c.b16 %v284, %v283
      %v315 = vpack.c.b16 %v286, %v285
      %v316 = vpack.c.b16 %v288, %v287
      %v317 = vpack.c.b16 %v290, %v289
      %v318 = vpack.c.b16 %v292, %v291
      %v319 = vpack.c.b16 %v294, %v293
      %v320 = vpack.c.b16 %v296, %v295
      %v321 = vpack.c.b16 %v298, %v297
      %v322 = vpack.c.b16 %v300, %v299
      %v323 = vpack.c.b16 %v302, %v301
      %v324 = vpack.c.b16 %v304, %v303
      %v325 = vpack.c.b16 %v306, %v305
      %v326 = vpack.c.b16 %v308, %v307
      %v327 = vpack.c.b16 %v310, %v309
      %v328 = vpack.c.b16 %v312, %v311
      %v331 = vunpack.c.l.b16 %v243
      %v332 = vunpack.c.l.b16 %v244
      %v333 = vpack.c.b16 %v332, %v331
      %vm334 = vcmask 121856
      %v336 = vsel %vm334, %v313, 0
      %v339 = vsel %vm334, %v314, 0
      %v342 = vsel %vm334, %v315, 0
      %v345 = vsel %vm334, %v316, 0
      %v348 = vsel %vm334, %v317, 0
      %v351 = vsel %vm334, %v318, 0
      %v354 = vsel %vm334, %v319, 0
      %v357 = vsel %vm334, %v320, 0
      %v360 = vsel %vm334, %v321, 0
      %v363 = vsel %vm334, %v322, 0
      %v366 = vsel %vm334, %v323, 0
      %v369 = vsel %vm334, %v324, 0
      %v372 = vsel %vm334, %v325, 0
      %v375 = vsel %vm334, %v326, 0
      %v378 = vsel %vm334, %v327, 0
      %v381 = vsel %vm334, %v328, 0
      %vm383 = vcmask 1046528
      %vm384 = vcmask 1047552
      %v385 = vsel %vm383, 4294967295, 65535
      %v386 = vsel %vm384, %v385, 0
      %v388 = vand.u32 %v333, %v386
      %390 = vmatpush.bf16.msra.mxu0 0
      %391 = vmatpush.bf16.msra.mxu0 0
      %392 = vmatpush.bf16.msra.mxu0 0
      %393 = vmatpush.bf16.msra.mxu0 0
      %394 = vmatpush.bf16.msra.mxu0 0
      %395 = vmatpush.bf16.msra.mxu0 0
      %396 = vmatpush.bf16.msra.mxu0 0
      %397 = vmatpush.bf16.msra.mxu0 %v388
      %398 = vmatmul.bf16.gmra.mxu0 %v336
      %v399 = vpop.f32.mrf.mxu0
      %v400 = vadd.f32 %v247, %v399
      %v401 = vpop.f32.mrf.mxu0
      %v402 = vadd.f32 %v247, %v401
      %403 = vmatmul.bf16.gmra.mxu0 %v339
      %v404 = vpop.f32.mrf.mxu0
      %v405 = vadd.f32 %v247, %v404
      %v406 = vpop.f32.mrf.mxu0
      %v407 = vadd.f32 %v247, %v406
      %408 = vmatmul.bf16.gmra.mxu0 %v342
      %v409 = vpop.f32.mrf.mxu0
      %v410 = vadd.f32 %v247, %v409
      %v411 = vpop.f32.mrf.mxu0
      %v412 = vadd.f32 %v247, %v411
      %413 = vmatmul.bf16.gmra.mxu0 %v345
      %v414 = vpop.f32.mrf.mxu0
      %v415 = vadd.f32 %v247, %v414
      %v416 = vpop.f32.mrf.mxu0
      %v417 = vadd.f32 %v247, %v416
      %418 = vmatmul.bf16.gmra.mxu0 %v348
      %v419 = vpop.f32.mrf.mxu0
      %v420 = vadd.f32 %v247, %v419
      %v421 = vpop.f32.mrf.mxu0
      %v422 = vadd.f32 %v247, %v421
      %423 = vmatmul.bf16.gmra.mxu0 %v351
      %v424 = vpop.f32.mrf.mxu0
      %v425 = vadd.f32 %v247, %v424
      %v426 = vpop.f32.mrf.mxu0
      %v427 = vadd.f32 %v247, %v426
      %428 = vmatmul.bf16.gmra.mxu0 %v354
      %v429 = vpop.f32.mrf.mxu0
      %v430 = vadd.f32 %v247, %v429
      %v431 = vpop.f32.mrf.mxu0
      %v432 = vadd.f32 %v247, %v431
      %433 = vmatmul.bf16.gmra.mxu0 %v357
      %v434 = vpop.f32.mrf.mxu0
      %v435 = vadd.f32 %v247, %v434
      %v436 = vpop.f32.mrf.mxu0
      %v437 = vadd.f32 %v247, %v436
      %438 = vmatmul.bf16.gmra.mxu0 %v360
      %v439 = vpop.f32.mrf.mxu0
      %v440 = vadd.f32 %v247, %v439
      %v441 = vpop.f32.mrf.mxu0
      %v442 = vadd.f32 %v247, %v441
      %443 = vmatmul.bf16.gmra.mxu0 %v363
      %v444 = vpop.f32.mrf.mxu0
      %v445 = vadd.f32 %v247, %v444
      %v446 = vpop.f32.mrf.mxu0
      %v447 = vadd.f32 %v247, %v446
      %448 = vmatmul.bf16.gmra.mxu0 %v366
      %v449 = vpop.f32.mrf.mxu0
      %v450 = vadd.f32 %v247, %v449
      %v451 = vpop.f32.mrf.mxu0
      %v452 = vadd.f32 %v247, %v451
      %453 = vmatmul.bf16.gmra.mxu0 %v369
      %v454 = vpop.f32.mrf.mxu0
      %v455 = vadd.f32 %v247, %v454
      %v456 = vpop.f32.mrf.mxu0
      %v457 = vadd.f32 %v247, %v456
      %458 = vmatmul.bf16.gmra.mxu0 %v372
      %v459 = vpop.f32.mrf.mxu0
      %v460 = vadd.f32 %v247, %v459
      %v461 = vpop.f32.mrf.mxu0
      %v462 = vadd.f32 %v247, %v461
      %463 = vmatmul.bf16.gmra.mxu0 %v375
      %v464 = vpop.f32.mrf.mxu0
      %v465 = vadd.f32 %v247, %v464
      %v466 = vpop.f32.mrf.mxu0
      %v467 = vadd.f32 %v247, %v466
      %468 = vmatmul.bf16.gmra.mxu0 %v378
      %v469 = vpop.f32.mrf.mxu0
      %v470 = vadd.f32 %v247, %v469
      %v471 = vpop.f32.mrf.mxu0
      %v472 = vadd.f32 %v247, %v471
      %473 = vmatmul.bf16.gmra.mxu0 %v381
      %v474 = vpop.f32.mrf.mxu0
      %v475 = vadd.f32 %v247, %v474
      %v476 = vpop.f32.mrf.mxu0
      %v477 = vadd.f32 %v247, %v476
      %478 = vdwg.mxu0
      %vm479 = vcmp.ge.f32.partialorder %v400, 0.0
      %vm480 = vcmp.ge.f32.partialorder %v402, 0.0
      %vm481 = vcmp.ge.f32.partialorder %v405, 0.0
      %vm482 = vcmp.ge.f32.partialorder %v407, 0.0
      %vm483 = vcmp.ge.f32.partialorder %v410, 0.0
      %vm484 = vcmp.ge.f32.partialorder %v412, 0.0
      %vm485 = vcmp.ge.f32.partialorder %v415, 0.0
      %vm486 = vcmp.ge.f32.partialorder %v417, 0.0
      %vm487 = vcmp.ge.f32.partialorder %v420, 0.0
      %vm488 = vcmp.ge.f32.partialorder %v422, 0.0
      %vm489 = vcmp.ge.f32.partialorder %v425, 0.0
      %vm490 = vcmp.ge.f32.partialorder %v427, 0.0
      %vm491 = vcmp.ge.f32.partialorder %v430, 0.0
      %vm492 = vcmp.ge.f32.partialorder %v432, 0.0
      %vm493 = vcmp.ge.f32.partialorder %v435, 0.0
      %vm494 = vcmp.ge.f32.partialorder %v437, 0.0
      %vm495 = vcmp.ge.f32.partialorder %v440, 0.0
      %vm496 = vcmp.ge.f32.partialorder %v442, 0.0
      %vm497 = vcmp.ge.f32.partialorder %v445, 0.0
      %vm498 = vcmp.ge.f32.partialorder %v447, 0.0
      %vm499 = vcmp.ge.f32.partialorder %v450, 0.0
      %vm500 = vcmp.ge.f32.partialorder %v452, 0.0
      %vm501 = vcmp.ge.f32.partialorder %v455, 0.0
      %vm502 = vcmp.ge.f32.partialorder %v457, 0.0
      %vm503 = vcmp.ge.f32.partialorder %v460, 0.0
      %vm504 = vcmp.ge.f32.partialorder %v462, 0.0
      %vm505 = vcmp.ge.f32.partialorder %v465, 0.0
      %vm506 = vcmp.ge.f32.partialorder %v467, 0.0
      %vm507 = vcmp.ge.f32.partialorder %v470, 0.0
      %vm508 = vcmp.ge.f32.partialorder %v472, 0.0
      %vm509 = vcmp.ge.f32.partialorder %v475, 0.0
      %vm510 = vcmp.ge.f32.partialorder %v477, 0.0
      %v511 = vmul.f32 %v400, 0.1
      %v512 = vmul.f32 %v402, 0.1
      %v513 = vmul.f32 %v405, 0.1
      %v514 = vmul.f32 %v407, 0.1
      %v515 = vmul.f32 %v410, 0.1
      %v516 = vmul.f32 %v412, 0.1
      %v517 = vmul.f32 %v415, 0.1
      %v518 = vmul.f32 %v417, 0.1
      %v519 = vmul.f32 %v420, 0.1
      %v520 = vmul.f32 %v422, 0.1
      %v521 = vmul.f32 %v425, 0.1
      %v522 = vmul.f32 %v427, 0.1
      %v523 = vmul.f32 %v430, 0.1
      %v524 = vmul.f32 %v432, 0.1
      %v525 = vmul.f32 %v435, 0.1
      %v526 = vmul.f32 %v437, 0.1
      %v527 = vmul.f32 %v440, 0.1
      %v528 = vmul.f32 %v442, 0.1
      %v529 = vmul.f32 %v445, 0.1
      %v530 = vmul.f32 %v447, 0.1
      %v531 = vmul.f32 %v450, 0.1
      %v532 = vmul.f32 %v452, 0.1
      %v533 = vmul.f32 %v455, 0.1
      %v534 = vmul.f32 %v457, 0.1
      %v535 = vmul.f32 %v460, 0.1
      %v536 = vmul.f32 %v462, 0.1
      %v537 = vmul.f32 %v465, 0.1
      %v538 = vmul.f32 %v467, 0.1
      %v539 = vmul.f32 %v470, 0.1
      %v540 = vmul.f32 %v472, 0.1
      %v541 = vmul.f32 %v475, 0.1
      %v542 = vmul.f32 %v477, 0.1
      %v543 = vsel %vm479, %v400, %v511
      %v544 = vsel %vm480, %v402, %v512
      %v545 = vsel %vm481, %v405, %v513
      %v546 = vsel %vm482, %v407, %v514
      %v547 = vsel %vm483, %v410, %v515
      %v548 = vsel %vm484, %v412, %v516
      %v549 = vsel %vm485, %v415, %v517
      %v550 = vsel %vm486, %v417, %v518
      %v551 = vsel %vm487, %v420, %v519
      %v552 = vsel %vm488, %v422, %v520
      %v553 = vsel %vm489, %v425, %v521
      %v554 = vsel %vm490, %v427, %v522
      %v555 = vsel %vm491, %v430, %v523
      %v556 = vsel %vm492, %v432, %v524
      %v557 = vsel %vm493, %v435, %v525
      %v558 = vsel %vm494, %v437, %v526
      %v559 = vsel %vm495, %v440, %v527
      %v560 = vsel %vm496, %v442, %v528
      %v561 = vsel %vm497, %v445, %v529
      %v562 = vsel %vm498, %v447, %v530
      %v563 = vsel %vm499, %v450, %v531
      %v564 = vsel %vm500, %v452, %v532
      %v565 = vsel %vm501, %v455, %v533
      %v566 = vsel %vm502, %v457, %v534
      %v567 = vsel %vm503, %v460, %v535
      %v568 = vsel %vm504, %v462, %v536
      %v569 = vsel %vm505, %v465, %v537
      %v570 = vsel %vm506, %v467, %v538
      %v571 = vsel %vm507, %v470, %v539
      %v572 = vsel %vm508, %v472, %v540
      %v573 = vsel %vm509, %v475, %v541
      %v574 = vsel %vm510, %v477, %v542
      %v575 = vpack.c.bf16 %v543, %v543
      %v576 = vpack.c.bf16 %v544, %v544
      %v577 = vpack.c.bf16 %v545, %v545
      %v578 = vpack.c.bf16 %v546, %v546
      %v579 = vpack.c.bf16 %v547, %v547
      %v580 = vpack.c.bf16 %v548, %v548
      %v581 = vpack.c.bf16 %v549, %v549
      %v582 = vpack.c.bf16 %v550, %v550
      %v583 = vpack.c.bf16 %v551, %v551
      %v584 = vpack.c.bf16 %v552, %v552
      %v585 = vpack.c.bf16 %v553, %v553
      %v586 = vpack.c.bf16 %v554, %v554
      %v587 = vpack.c.bf16 %v555, %v555
      %v588 = vpack.c.bf16 %v556, %v556
      %v589 = vpack.c.bf16 %v557, %v557
      %v590 = vpack.c.bf16 %v558, %v558
      %v591 = vpack.c.bf16 %v559, %v559
      %v592 = vpack.c.bf16 %v560, %v560
      %v593 = vpack.c.bf16 %v561, %v561
      %v594 = vpack.c.bf16 %v562, %v562
      %v595 = vpack.c.bf16 %v563, %v563
      %v596 = vpack.c.bf16 %v564, %v564
      %v597 = vpack.c.bf16 %v565, %v565
      %v598 = vpack.c.bf16 %v566, %v566
      %v599 = vpack.c.bf16 %v567, %v567
      %v600 = vpack.c.bf16 %v568, %v568
      %v601 = vpack.c.bf16 %v569, %v569
      %v602 = vpack.c.bf16 %v570, %v570
      %v603 = vpack.c.bf16 %v571, %v571
      %v604 = vpack.c.bf16 %v572, %v572
      %v605 = vpack.c.bf16 %v573, %v573
      %v606 = vpack.c.bf16 %v574, %v574
      %vm607 = vcmask 125952
      %608 = vst.msk [vmem:[%s208] sm:$0xf] %vm607, %v575
      %609 = vst.msk [vmem:[%s208 + $0x4] sm:$0xf] %vm607, %v576
      %610 = vst.msk [vmem:[%s208 + $0x8] sm:$0xf] %vm607, %v577
      %611 = vst.msk [vmem:[%s208 + $0xc] sm:$0xf] %vm607, %v578
      %612 = vst.msk [vmem:[%s208 + $0x10] sm:$0xf] %vm607, %v579
      %613 = vst.msk [vmem:[%s208 + $0x14] sm:$0xf] %vm607, %v580
      %614 = vst.msk [vmem:[%s208 + $0x18] sm:$0xf] %vm607, %v581
      %615 = vst.msk [vmem:[%s208 + $0x1c] sm:$0xf] %vm607, %v582
      %616 = vst.msk [vmem:[%s208 + $0x20] sm:$0xf] %vm607, %v583
      %617 = vst.msk [vmem:[%s208 + $0x24] sm:$0xf] %vm607, %v584
      %618 = vst.msk [vmem:[%s208 + $0x28] sm:$0xf] %vm607, %v585
      %619 = vst.msk [vmem:[%s208 + $0x2c] sm:$0xf] %vm607, %v586
      %620 = vst.msk [vmem:[%s208 + $0x30] sm:$0xf] %vm607, %v587
      %621 = vst.msk [vmem:[%s208 + $0x34] sm:$0xf] %vm607, %v588
      %622 = vst.msk [vmem:[%s208 + $0x38] sm:$0xf] %vm607, %v589
      %623 = vst.msk [vmem:[%s208 + $0x3c] sm:$0xf] %vm607, %v590
      %624 = vst.msk [vmem:[%s208 + $0x40] sm:$0xf] %vm607, %v591
      %625 = vst.msk [vmem:[%s208 + $0x44] sm:$0xf] %vm607, %v592
      %626 = vst.msk [vmem:[%s208 + $0x48] sm:$0xf] %vm607, %v593
      %627 = vst.msk [vmem:[%s208 + $0x4c] sm:$0xf] %vm607, %v594
      %628 = vst.msk [vmem:[%s208 + $0x50] sm:$0xf] %vm607, %v595
      %629 = vst.msk [vmem:[%s208 + $0x54] sm:$0xf] %vm607, %v596
      %630 = vst.msk [vmem:[%s208 + $0x58] sm:$0xf] %vm607, %v597
      %631 = vst.msk [vmem:[%s208 + $0x5c] sm:$0xf] %vm607, %v598
      %632 = vst.msk [vmem:[%s208 + $0x60] sm:$0xf] %vm607, %v599
      %633 = vst.msk [vmem:[%s208 + $0x64] sm:$0xf] %vm607, %v600
      %634 = vst.msk [vmem:[%s208 + $0x68] sm:$0xf] %vm607, %v601
      %635 = vst.msk [vmem:[%s208 + $0x6c] sm:$0xf] %vm607, %v602
      %636 = vst.msk [vmem:[%s208 + $0x70] sm:$0xf] %vm607, %v603
      %637 = vst.msk [vmem:[%s208 + $0x74] sm:$0xf] %vm607, %v604
      %638 = vst.msk [vmem:[%s208 + $0x78] sm:$0xf] %vm607, %v605
      %639 = vst.msk [vmem:[%s208 + $0x7c] sm:$0xf] %vm607, %v606
      %s640 = smul.u32 32, %s19
      %p641 = scmp.lt.s32.totalorder %s18, 1
      %s642 = scalar_select %p641, %s18, 1
      %p643 = scmp.lt.s32.totalorder %s640, 31
      %s644 = scalar_select %p643, %s640, 31
      %s645 = smul.addr %s642, 32
      %s646 = sadd.s32 %s644, %s645
      %s647 = smul.addr %s646, 4
      %s648 = scalar_lea.vmem %s3, %s647
      // Predicated region
      $region33: #{tpu_custom_call.1} parent=31 // pred_check
        %p649 = pneg %p116
      $region34: #{tpu_custom_call.1} parent=31 // pred_check_branch
        %651 = sbr.rel (%p649) target = $region36
      $region35: #{tpu_custom_call.1} parent=31 // pred_region
        %s652 = smul.u32 32, %s19
      $region36: #{tpu_custom_call.1} parent=31 // pred_fallthru
        _
    $region32: #{tpu_custom_call.1} parent=5 // pred_fallthru
      _
    %p653 = scmp.le.s32.totalorder 2, %s9
    // Predicated region
    $region37: #{tpu_custom_call.1} parent=5 // pred_check
      %p654 = pneg %p653
    $region38: #{tpu_custom_call.1} parent=5 // pred_check_branch
      %656 = sbr.rel (%p654) target = $region40
    $region39: #{tpu_custom_call.1} parent=5 // pred_region
      %s657 = ssub.s32 %s9, 2
      // Predicated region
      $region41: #{tpu_custom_call.1} parent=39 // pred_check
        %p658 = pneg %p122
      $region42: #{tpu_custom_call.1} parent=39 // pred_check_branch
        %660 = sbr.rel (%p658) target = $region44
      $region43: #{tpu_custom_call.1} parent=39 // pred_region
        %s661 = smul.u32 32, %s21
        %p662 = scmp.lt.s32.totalorder %s20, 1
        %s663 = scalar_select %p662, %s20, 1
        %p664 = scmp.lt.s32.totalorder %s661, 31
        %s665 = scalar_select %p664, %s661, 31
        %s666 = smul.addr %s663, 32
        %s667 = sadd.s32 %s665, %s666
        %s668 = smul.addr %s667, 4
        %s669 = scalar_lea.vmem %s3, %s668
      $region44: #{tpu_custom_call.1} parent=39 // pred_fallthru
        _
    $region40: #{tpu_custom_call.1} parent=5 // pred_fallthru
      _
  $region6: #{tpu_custom_call.1} parent=0 // loop_footer
    %s13 = sadd.s32 1, %s9
  $region7: #{tpu_custom_call.1} parent=0 // loop_footer_branch
    %8 = sbr.rel target = $region3
  $region8: #{tpu_custom_call.1} parent=0 // loop_exit
    _

</llo_original>
